<compile_context>
chip_gen: v6e
topology: v6e:2x2x1
jax: 0.10.0
libtpu: 0.0.40
codegen_flags: <defaults>
</compile_context>

<pallas_src>
import numpy as np
import jax
import jax.numpy as jnp
from jax.experimental import pallas as pl
from jax.experimental.pallas import tpu as pltpu

NUM_JOINTS = 24
NUM_BETAS = 10
POSE_FEAT = (NUM_JOINTS - 1) * 9          # 207
BLEND_FEAT = NUM_BETAS + POSE_FEAT        # 217
BLEND_FEAT_PAD = 224                      # multiple of 32 (int8 sublane pack)


def _round_up(x, m):
    return ((x + m - 1) // m) * m


def _pick_vertex_tile(V, max_tv=3584):
    """Vertex tile (multiple of 128) and padded vertex count.

    Prefers an EVEN number of tiles (>= 2) so a v7x megacore can shard the
    vertex grid axis across both TensorCores, with tiles as large as possible
    (<= max_tv) to amortize per-step pipeline overhead on v5e/v6e.
    """
    v_round = _round_up(V, 128)
    if v_round <= 128:
        return 128, 128
    n_tiles = max(2, -(-v_round // max_tv))
    if n_tiles % 2:
        n_tiles += 1
    tv = _round_up(-(-v_round // n_tiles), 128)
    return tv, tv * n_tiles


# --------------------------------------------------------------------------
# Pallas kernel: per-vertex-tile LBS
# --------------------------------------------------------------------------
def lbs_kernel(feat_ref, aexp_ref, vt_ref, bd_ref, wt_ref, out_ref):
    B = feat_ref.shape[0]

    # Per-vertex skinning-matrix rows (only the 3 used rows of the 4x4):
    #   t_all[(r*4 + c)*B + b, v] = sum_j A[b, j, r, c] * W[v, j]
    t_all = jnp.dot(aexp_ref[...], wt_ref[...],
                    preferred_element_type=jnp.float32)           # (12*B, TV) f32

    # Fused shape + pose blendshapes. Per-feature scales are already folded
    # into `feat` in the glue, so the int8 table only needs a VPU cast before
    # the bf16 MXU dot (works on all generations, incl. v7x with no int MXU).
    feat = feat_ref[...].astype(jnp.bfloat16)                     # (B, 224)
    vt = vt_ref[...]                                              # (3, TV) f32

    v_posed = []
    for c in range(3):
        tab_c = bd_ref[c].astype(jnp.bfloat16)                    # (224, TV)
        blend_c = jnp.dot(feat, tab_c,
                          preferred_element_type=jnp.float32)     # (B, TV)
        v_posed.append(vt[c:c + 1, :] + blend_c)

    # verts[r] = sum_c T[r, c] * v_posed[c] + T[r, 3]; lane-dense direct stores.
    for r in range(3):
        k = r * 4
        vert_r = (t_all[(k + 0) * B:(k + 1) * B, :] * v_posed[0]
                  + t_all[(k + 1) * B:(k + 2) * B, :] * v_posed[1]
                  + t_all[(k + 2) * B:(k + 3) * B, :] * v_posed[2]
                  + t_all[(k + 3) * B:(k + 4) * B, :])
        out_ref[r * B:(r + 1) * B, :] = vert_r.astype(out_ref.dtype)


def lbs_pallas(feat, a_exp, v_template_t, blenddirs_q, w_t, *, tv):
    """feat (B,224) f32 (feature-scale prefolded), a_exp (12*B,24) f32,
    v_template_t (3,Vp) f32, blenddirs_q (3,224,Vp) int8, w_t (24,Vp) f32
    -> (3*B, Vp) f32 with row index = coord*B + batch."""
    B = feat.shape[0]
    Vp = v_template_t.shape[1]
    assert Vp % tv == 0
    grid = (Vp // tv,)
    out = pl.pallas_call(
        lbs_kernel,
        out_shape=jax.ShapeDtypeStruct((3 * B, Vp), jnp.float32),
        grid_spec=pltpu.PrefetchScalarGridSpec(
            num_scalar_prefetch=0,
            grid=grid,
            in_specs=[
                pl.BlockSpec((B, BLEND_FEAT_PAD), lambda v: (0, 0)),
                pl.BlockSpec((12 * B, NUM_JOINTS), lambda v: (0, 0)),
                pl.BlockSpec((3, tv), lambda v: (0, v)),
                pl.BlockSpec((3, BLEND_FEAT_PAD, tv), lambda v: (0, 0, v)),
                pl.BlockSpec((NUM_JOINTS, tv), lambda v: (0, v)),
            ],
            out_specs=pl.BlockSpec((3 * B, tv), lambda v: (0, v)),
        ),
        compiler_params=pltpu.CompilerParams(
            dimension_semantics=("parallel",),
            vmem_limit_bytes=32 * 1024 * 1024),
    )(feat, a_exp, v_template_t, blenddirs_q, w_t)
    return out  # (3*B, Vp)


# --------------------------------------------------------------------------
# Plain-JAX glue: Rodrigues + kinematic chain (tiny, 24 joints)
# --------------------------------------------------------------------------
def batch_rodrigues(rot_vecs):
    """rot_vecs: (N, 3) axis-angle -> (N, 3, 3) rotation matrices (smplx-style)."""
    N = rot_vecs.shape[0]
    angle = jnp.linalg.norm(rot_vecs + 1e-8, axis=1, keepdims=True)  # (N, 1)
    rot_dir = rot_vecs / angle
    cos = jnp.cos(angle).reshape(N, 1, 1)
    sin = jnp.sin(angle).reshape(N, 1, 1)
    rx, ry, rz = rot_dir[:, 0], rot_dir[:, 1], rot_dir[:, 2]
    zeros = jnp.zeros(N, dtype=rot_vecs.dtype)
    K = jnp.stack([zeros, -rz, ry,
                   rz, zeros, -rx,
                   -ry, rx, zeros], axis=1).reshape(N, 3, 3)
    ident = jnp.eye(3, dtype=rot_vecs.dtype)[None]
    return ident + sin * K + (1.0 - cos) * jnp.matmul(K, K)


def batch_rigid_transform(rot_mats, joints, parents):
    """rot_mats (B, J, 3, 3), joints (B, J, 3) -> posed_joints (B, J, 3), A (B, J, 4, 4)."""
    B, J = joints.shape[:2]
    rel_joints = joints.at[:, 1:].add(-joints[:, parents[1:]])
    tm = jnp.concatenate([rot_mats, rel_joints[..., None]], axis=-1)        # (B, J, 3, 4)
    bottom = jnp.broadcast_to(
        jnp.array([0.0, 0.0, 0.0, 1.0], dtype=joints.dtype), (B, J, 1, 4))
    tm = jnp.concatenate([tm, bottom], axis=-2)                             # (B, J, 4, 4)
    chain = [tm[:, 0]]
    for i in range(1, J):
        chain.append(jnp.matmul(chain[int(parents[i])], tm[:, i]))
    transforms = jnp.stack(chain, axis=1)                                   # (B, J, 4, 4)
    posed_joints = transforms[:, :, :3, 3]
    joints_hom = jnp.concatenate(
        [joints, jnp.zeros((B, J, 1), dtype=joints.dtype)], axis=-1)        # (B, J, 4)
    correction = jnp.einsum('bnij,bnj->bni', transforms, joints_hom)        # (B, J, 4)
    rel_transforms = transforms.at[:, :, :, 3].add(-correction)
    return posed_joints, rel_transforms


# --------------------------------------------------------------------------
# SMPL_Layer equivalent with deterministic synthetic parameters
# --------------------------------------------------------------------------
class SMPLLayerPallas:
    # TODO(synk): real smplx model-file loading (.pkl) and .npy regressor files
    # are replaced by deterministic synthetic parameters of the same structure.
    def __init__(self, vertex_num=512, with_genders=True, max_tv=3584):
        self.vertex_num = vertex_num
        self.with_genders = with_genders
        self.tv, self.v_pad = _pick_vertex_tile(vertex_num, max_tv=max_tv)
        self.parents = np.array(
            [-1, 0, 0, 0, 1, 2, 3, 4, 5, 6, 7, 8, 9, 9, 9,
             12, 13, 14, 16, 17, 18, 19, 20, 21], dtype=np.int32)
        # vertex_joint_selector extra joints (21 for SMPL), deterministic indices
        self.extra_joints_idxs = (np.arange(21) * 31) % vertex_num
        # unused-by-forward attributes kept for fidelity with the module
        self.body_vertex_idx = (np.arange(64) * 7) % vertex_num
        self.faces = np.stack([np.arange(32), np.arange(32) + 1,
                               np.arange(32) + 2], axis=1) % vertex_num

        genders = ('neutral', 'male', 'female') if with_genders else ('neutral',)
        key = jax.random.PRNGKey(0)
        pad = self.v_pad - vertex_num

        self.params = {}
        for gi, g in enumerate(genders):
            ks = jax.random.split(jax.random.fold_in(key, gi), 6)
            V = vertex_num
            v_template = jax.random.normal(ks[0], (V, 3), jnp.float32) * 0.1
            shapedirs = jax.random.normal(ks[1], (V, 3, NUM_BETAS), jnp.float32) * 0.01
            posedirs = jax.random.normal(ks[2], (POSE_FEAT, V * 3), jnp.float32) * 0.01
            J_regressor = jax.nn.softmax(
                jax.random.normal(ks[3], (NUM_JOINTS, V), jnp.float32), axis=-1)
            lbs_weights = jax.nn.softmax(
                jax.random.normal(ks[4], (V, NUM_JOINTS), jnp.float32) * 4.0, axis=-1)

            # kernel-layout precomputes ------------------------------------
            shapedirs_t = jnp.transpose(shapedirs, (1, 2, 0))               # (3, 10, V)
            posedirs_t = jnp.transpose(
                posedirs.reshape(POSE_FEAT, V, 3), (2, 0, 1))               # (3, 207, V)
            blend_t = jnp.concatenate([shapedirs_t, posedirs_t], axis=1)    # (3, 217, V)
            # pad features 217 -> 224 and vertices V -> Vp (zeros => quantize to 0)
            blend_t = jnp.pad(
                blend_t, ((0, 0), (0, BLEND_FEAT_PAD - BLEND_FEAT), (0, pad)))
            # per-feature int8 quantization; scales folded into feat at run time
            absmax = jnp.max(jnp.abs(blend_t), axis=(0, 2))                 # (224,)
            blend_scale = jnp.where(absmax > 0, absmax / 127.0, 1.0)
            blenddirs_q = jnp.clip(
                jnp.round(blend_t / blend_scale[None, :, None]),
                -127, 127).astype(jnp.int8)                                 # (3, 224, Vp)

            p = {
                'v_template': v_template,
                'shapedirs': shapedirs,
                'posedirs': posedirs,
                'J_regressor': J_regressor,
                'lbs_weights': lbs_weights,
                # padded, kernel-ready tensors
                'v_template_t': jnp.pad(v_template.T, ((0, 0), (0, pad))),  # (3, Vp) f32
                'blenddirs_q': blenddirs_q,                                 # (3, 224, Vp) int8
                'blend_scale': blend_scale.astype(jnp.float32),             # (224,) f32
                'w_t': jnp.pad(lbs_weights.T, ((0, 0), (0, pad))),          # (24, Vp) f32
                # joint-regressor precomputes (J = Jt + Jsd @ betas)
                'J_template': J_regressor @ v_template,                     # (24, 3)
                'J_shapedirs': jnp.einsum('jv,vck->jck', J_regressor, shapedirs),
            }
            self.params[g] = p
        self.smpl2h36m_regressor = jax.nn.softmax(
            jax.random.normal(jax.random.fold_in(key, 99), (17, vertex_num)), axis=-1)

    # ----- equivalent of self.layers[gender](betas=..., global_orient=..., body_pose=...)
    def forward_single_gender(self, poses, betas, gender='neutral'):
        bs = poses.shape[0]
        if poses.ndim == 2:
            poses = poses.reshape(bs, -1, 3)
        assert poses.shape[1] == NUM_JOINTS
        p = self.params[gender]

        rot_mats = batch_rodrigues(poses.reshape(-1, 3)).reshape(bs, NUM_JOINTS, 3, 3)
        pose_feat = (rot_mats[:, 1:] - jnp.eye(3, dtype=jnp.float32)).reshape(bs, POSE_FEAT)
        feat = jnp.concatenate([betas, pose_feat], axis=1)                  # (B, 217)
        feat = jnp.pad(feat, ((0, 0), (0, BLEND_FEAT_PAD - BLEND_FEAT)))    # (B, 224)
        feat = feat * p['blend_scale'][None, :]                             # fold int8 scales

        # rest joints from the shaped template (linear, so precomputed regressors)
        J = p['J_template'][None] + jnp.einsum('jck,bk->bjc', p['J_shapedirs'], betas)
        posed_joints, A = batch_rigid_transform(rot_mats, J, self.parents)

        # Only the 3 used rows of the 4x4, ordered so the kernel can take
        # contiguous row windows:  a_exp[(r*4 + c)*B + b, j] = A[b, j, r, c]
        a_exp = jnp.transpose(A[:, :, :3, :], (2, 3, 0, 1)).reshape(12 * bs, NUM_JOINTS)

        verts_flat = lbs_pallas(feat, a_exp,
                                p['v_template_t'], p['blenddirs_q'], p['w_t'],
                                tv=self.tv)                                 # (3*B, Vp)
        vertices = jnp.transpose(
            verts_flat.reshape(3, bs, self.v_pad)[:, :, :self.vertex_num],
            (1, 2, 0))                                                      # (B, V, 3)
        # vertex_joint_selector: append extra vertex joints
        joints = jnp.concatenate(
            [posed_joints, vertices[:, self.extra_joints_idxs]], axis=1)    # (B, 45, 3)
        return vertices, joints

    def __call__(self, poses, betas, genders=None):
        bs = poses.shape[0]
        assert poses.shape[0] == betas.shape[0]
        if genders is None:
            return self.forward_single_gender(poses, betas)
        assert len(genders) == bs
        assert set(genders) <= {'male', 'female'}
        assert self.with_genders
        male_idx = [i for i, g in enumerate(genders) if g == 'male']
        if len(male_idx) == bs:
            return self.forward_single_gender(poses, betas, gender='male')
        elif len(male_idx) == 0:
            return self.forward_single_gender(poses, betas, gender='female')
        # Matches the PyTorch module: full female pass + male pass on the subset.
        vertices, joints = self.forward_single_gender(poses, betas, gender='female')
        midx = jnp.array(male_idx, dtype=jnp.int32)
        v_m, j_m = self.forward_single_gender(poses[midx], betas[midx], gender='male')
        vertices = vertices.at[midx].set(v_m)
        joints = joints.at[midx].set(j_m)
        return vertices, joints


# --------------------------------------------------------------------------
# Pure-JAX reference (smplx lbs) for correctness checking
# --------------------------------------------------------------------------
def lbs_reference(poses, betas, p, parents):
    bs = poses.shape[0]
    V = p['v_template'].shape[0]
    poses = poses.reshape(bs, NUM_JOINTS, 3)
    v_shaped = p['v_template'][None] + jnp.einsum('bk,vck->bvc', betas, p['shapedirs'])
    J = jnp.einsum('jv,bvc->bjc', p['J_regressor'], v_shaped)
    rot_mats = batch_rodrigues(poses.reshape(-1, 3)).reshape(bs, NUM_JOINTS, 3, 3)
    pose_feat = (rot_mats[:, 1:] - jnp.eye(3, dtype=jnp.float32)).reshape(bs, POSE_FEAT)
    pose_offsets = (pose_feat @ p['posedirs']).reshape(bs, V, 3)
    v_posed = v_shaped + pose_offsets
    posed_joints, A = batch_rigid_transform(rot_mats, J, parents)
    T = jnp.einsum('vj,bjrc->bvrc', p['lbs_weights'], A)
    vph = jnp.concatenate([v_posed, jnp.ones((bs, V, 1), jnp.float32)], axis=-1)
    verts = jnp.einsum('bvrc,bvc->bvr', T, vph)[..., :3]
    return verts, posed_joints


if __name__ == "__main__":
    B, V = 2, 512
    layer = SMPLLayerPallas(vertex_num=V, with_genders=True)

    key = jax.random.PRNGKey(0)
    k1, k2 = jax.random.split(key)
    poses = jax.random.normal(k1, (B, NUM_JOINTS * 3), jnp.float32) * 0.2
    betas = jax.random.normal(k2, (B, NUM_BETAS), jnp.float32) * 0.5

    # neutral path (genders=None)
    verts_n, joints_n = layer(poses, betas)
    jax.block_until_ready((verts_n, joints_n))
    assert verts_n.shape == (B, V, 3) and joints_n.shape == (B, NUM_JOINTS + 21, 3)

    # mixed-gender path (female pass + male scatter, matching the PyTorch module)
    verts_g, joints_g = layer(poses, betas, genders=['male', 'female'])
    jax.block_until_ready((verts_g, joints_g))

    # correctness check of the Pallas LBS kernel against a pure-JAX f32 reference
    # (kernel streams the blendshape table as per-feature-scaled int8 with bf16
    #  features on the MXU, hence the documented quantization tolerance)
    v_ref, j_ref = lbs_reference(poses, betas, layer.params['neutral'], layer.parents)
    np.testing.assert_allclose(np.asarray(verts_n), np.asarray(v_ref),
                               rtol=3e-3, atol=3e-3)
    np.testing.assert_allclose(np.asarray(joints_n[:, :NUM_JOINTS]), np.asarray(j_ref),
                               rtol=3e-3, atol=3e-3)

    print("KERNEL_OK")
</pallas_src>

<mosaic_0001>
module attributes {stable_mosaic.version = 11 : i64} {
  func.func @lbs_kernel(%arg0: i32, %arg1: memref<2x224xf32, #tpu.memory_space<vmem>>, %arg2: memref<24x24xf32, #tpu.memory_space<vmem>>, %arg3: memref<3x256xf32, #tpu.memory_space<vmem>>, %arg4: memref<3x224x256xi8, #tpu.memory_space<vmem>>, %arg5: memref<24x256xf32, #tpu.memory_space<vmem>>, %arg6: memref<6x256xf32, #tpu.memory_space<vmem>>) attributes {dimension_semantics = [#tpu.dimension_semantics<parallel>], iteration_bounds = array<i64: 2>, scalar_prefetch = 0 : i64, scratch_operands = 0 : i64, tpu.core_type = #tpu.core_type<tc>, window_params = [{pipeline_mode = #tpu.pipeline_mode<synchronous>, transform_indices = @transform_0, window_bounds = array<i64: 2, 224>}, {pipeline_mode = #tpu.pipeline_mode<synchronous>, transform_indices = @transform_1, window_bounds = array<i64: 24, 24>}, {transform_indices = @transform_2, window_bounds = array<i64: 3, 256>}, {transform_indices = @transform_3, window_bounds = array<i64: 3, 224, 256>}, {transform_indices = @transform_4, window_bounds = array<i64: 24, 256>}, {transform_indices = @transform_5, window_bounds = array<i64: 6, 256>}]} {
    %c0 = arith.constant 0 : index
    %c0_0 = arith.constant 0 : index
    %0 = vector.load %arg2[%c0, %c0_0] : memref<24x24xf32, #tpu.memory_space<vmem>>, vector<24x24xf32>
    %c0_1 = arith.constant 0 : index
    %c0_2 = arith.constant 0 : index
    %1 = vector.load %arg5[%c0_1, %c0_2] : memref<24x256xf32, #tpu.memory_space<vmem>>, vector<24x256xf32>
    %cst = arith.constant dense<0.000000e+00> : vector<24x256xf32>
    %2 = tpu.matmul %0, %1, %cst {dimension_numbers = #tpu.dot_dimension_numbers<[1], [0], [0], [1], [0, 0, 1, 1], [], []>} : vector<24x24xf32>, vector<24x256xf32>, vector<24x256xf32> -> vector<24x256xf32>
    %c0_3 = arith.constant 0 : index
    %c0_4 = arith.constant 0 : index
    %3 = vector.load %arg1[%c0_3, %c0_4] : memref<2x224xf32, #tpu.memory_space<vmem>>, vector<2x224xf32>
    %4 = arith.truncf %3 : vector<2x224xf32> to vector<2x224xbf16>
    %c0_5 = arith.constant 0 : index
    %c0_6 = arith.constant 0 : index
    %5 = vector.load %arg3[%c0_5, %c0_6] : memref<3x256xf32, #tpu.memory_space<vmem>>, vector<3x256xf32>
    %c0_7 = arith.constant 0 : index
    %c0_8 = arith.constant 0 : index
    %c0_9 = arith.constant 0 : index
    %6 = vector.load %arg4[%c0_7, %c0_8, %c0_9] : memref<3x224x256xi8, #tpu.memory_space<vmem>>, vector<1x224x256xi8>
    %7 = vector.shape_cast %6 : vector<1x224x256xi8> to vector<224x256xi8>
    %8 = arith.sitofp %7 : vector<224x256xi8> to vector<224x256xbf16>
    %cst_10 = arith.constant dense<0.000000e+00> : vector<2x256xf32>
    %9 = tpu.matmul %4, %8, %cst_10 {dimension_numbers = #tpu.dot_dimension_numbers<[1], [0], [0], [1], [0, 0, 1, 1], [], []>} : vector<2x224xbf16>, vector<224x256xbf16>, vector<2x256xf32> -> vector<2x256xf32>
    %10 = vector.extract_strided_slice %5 {offsets = [0, 0], sizes = [1, 256], strides = [1, 1]} : vector<3x256xf32> to vector<1x256xf32>
    %11 = vector.broadcast %10 : vector<1x256xf32> to vector<2x256xf32>
    %12 = arith.addf %11, %9 : vector<2x256xf32>
    %c1 = arith.constant 1 : index
    %c0_11 = arith.constant 0 : index
    %c0_12 = arith.constant 0 : index
    %13 = vector.load %arg4[%c1, %c0_11, %c0_12] : memref<3x224x256xi8, #tpu.memory_space<vmem>>, vector<1x224x256xi8>
    %14 = vector.shape_cast %13 : vector<1x224x256xi8> to vector<224x256xi8>
    %15 = arith.sitofp %14 : vector<224x256xi8> to vector<224x256xbf16>
    %cst_13 = arith.constant dense<0.000000e+00> : vector<2x256xf32>
    %16 = tpu.matmul %4, %15, %cst_13 {dimension_numbers = #tpu.dot_dimension_numbers<[1], [0], [0], [1], [0, 0, 1, 1], [], []>} : vector<2x224xbf16>, vector<224x256xbf16>, vector<2x256xf32> -> vector<2x256xf32>
    %17 = vector.extract_strided_slice %5 {offsets = [1, 0], sizes = [1, 256], strides = [1, 1]} : vector<3x256xf32> to vector<1x256xf32>
    %18 = vector.broadcast %17 : vector<1x256xf32> to vector<2x256xf32>
    %19 = arith.addf %18, %16 : vector<2x256xf32>
    %c2 = arith.constant 2 : index
    %c0_14 = arith.constant 0 : index
    %c0_15 = arith.constant 0 : index
    %20 = vector.load %arg4[%c2, %c0_14, %c0_15] : memref<3x224x256xi8, #tpu.memory_space<vmem>>, vector<1x224x256xi8>
    %21 = vector.shape_cast %20 : vector<1x224x256xi8> to vector<224x256xi8>
    %22 = arith.sitofp %21 : vector<224x256xi8> to vector<224x256xbf16>
    %cst_16 = arith.constant dense<0.000000e+00> : vector<2x256xf32>
    %23 = tpu.matmul %4, %22, %cst_16 {dimension_numbers = #tpu.dot_dimension_numbers<[1], [0], [0], [1], [0, 0, 1, 1], [], []>} : vector<2x224xbf16>, vector<224x256xbf16>, vector<2x256xf32> -> vector<2x256xf32>
    %24 = vector.extract_strided_slice %5 {offsets = [2, 0], sizes = [1, 256], strides = [1, 1]} : vector<3x256xf32> to vector<1x256xf32>
    %25 = vector.broadcast %24 : vector<1x256xf32> to vector<2x256xf32>
    %26 = arith.addf %25, %23 : vector<2x256xf32>
    %27 = vector.extract_strided_slice %2 {offsets = [0, 0], sizes = [2, 256], strides = [1, 1]} : vector<24x256xf32> to vector<2x256xf32>
    %28 = arith.mulf %27, %12 : vector<2x256xf32>
    %29 = vector.extract_strided_slice %2 {offsets = [2, 0], sizes = [2, 256], strides = [1, 1]} : vector<24x256xf32> to vector<2x256xf32>
    %30 = arith.mulf %29, %19 : vector<2x256xf32>
    %31 = arith.addf %28, %30 : vector<2x256xf32>
    %32 = vector.extract_strided_slice %2 {offsets = [4, 0], sizes = [2, 256], strides = [1, 1]} : vector<24x256xf32> to vector<2x256xf32>
    %33 = arith.mulf %32, %26 : vector<2x256xf32>
    %34 = arith.addf %31, %33 : vector<2x256xf32>
    %35 = vector.extract_strided_slice %2 {offsets = [6, 0], sizes = [2, 256], strides = [1, 1]} : vector<24x256xf32> to vector<2x256xf32>
    %36 = arith.addf %34, %35 : vector<2x256xf32>
    %c0_17 = arith.constant 0 : index
    %c0_18 = arith.constant 0 : index
    %37 = vector.load %arg6[%c0_17, %c0_18] : memref<6x256xf32, #tpu.memory_space<vmem>>, vector<2x256xf32>
    tpu.vector_store %arg6[%c0_17, %c0_18], %36 {strides = array<i32>} : memref<6x256xf32, #tpu.memory_space<vmem>>, vector<2x256xf32>,
    %38 = vector.extract_strided_slice %2 {offsets = [8, 0], sizes = [2, 256], strides = [1, 1]} : vector<24x256xf32> to vector<2x256xf32>
    %39 = arith.mulf %38, %12 : vector<2x256xf32>
    %40 = vector.extract_strided_slice %2 {offsets = [10, 0], sizes = [2, 256], strides = [1, 1]} : vector<24x256xf32> to vector<2x256xf32>
    %41 = arith.mulf %40, %19 : vector<2x256xf32>
    %42 = arith.addf %39, %41 : vector<2x256xf32>
    %43 = vector.extract_strided_slice %2 {offsets = [12, 0], sizes = [2, 256], strides = [1, 1]} : vector<24x256xf32> to vector<2x256xf32>
    %44 = arith.mulf %43, %26 : vector<2x256xf32>
    %45 = arith.addf %42, %44 : vector<2x256xf32>
    %46 = vector.extract_strided_slice %2 {offsets = [14, 0], sizes = [2, 256], strides = [1, 1]} : vector<24x256xf32> to vector<2x256xf32>
    %47 = arith.addf %45, %46 : vector<2x256xf32>
    %c2_19 = arith.constant 2 : index
    %c0_20 = arith.constant 0 : index
    %48 = vector.load %arg6[%c2_19, %c0_20] : memref<6x256xf32, #tpu.memory_space<vmem>>, vector<2x256xf32>
    tpu.vector_store %arg6[%c2_19, %c0_20], %47 {strides = array<i32>} : memref<6x256xf32, #tpu.memory_space<vmem>>, vector<2x256xf32>,
    %49 = vector.extract_strided_slice %2 {offsets = [16, 0], sizes = [2, 256], strides = [1, 1]} : vector<24x256xf32> to vector<2x256xf32>
    %50 = arith.mulf %49, %12 : vector<2x256xf32>
    %51 = vector.extract_strided_slice %2 {offsets = [18, 0], sizes = [2, 256], strides = [1, 1]} : vector<24x256xf32> to vector<2x256xf32>
    %52 = arith.mulf %51, %19 : vector<2x256xf32>
    %53 = arith.addf %50, %52 : vector<2x256xf32>
    %54 = vector.extract_strided_slice %2 {offsets = [20, 0], sizes = [2, 256], strides = [1, 1]} : vector<24x256xf32> to vector<2x256xf32>
    %55 = arith.mulf %54, %26 : vector<2x256xf32>
    %56 = arith.addf %53, %55 : vector<2x256xf32>
    %57 = vector.extract_strided_slice %2 {offsets = [22, 0], sizes = [2, 256], strides = [1, 1]} : vector<24x256xf32> to vector<2x256xf32>
    %58 = arith.addf %56, %57 : vector<2x256xf32>
    %c4 = arith.constant 4 : index
    %c0_21 = arith.constant 0 : index
    %59 = vector.load %arg6[%c4, %c0_21] : memref<6x256xf32, #tpu.memory_space<vmem>>, vector<2x256xf32>
    tpu.vector_store %arg6[%c4, %c0_21], %58 {strides = array<i32>} : memref<6x256xf32, #tpu.memory_space<vmem>>, vector<2x256xf32>,
    return
  }
  func.func @transform_0(%arg0: i32) -> (i32, i32) {
    %c0_i32 = arith.constant 0 : i32
    %c0_i32_0 = arith.constant 0 : i32
    %c0_i32_1 = arith.constant 0 : i32
    return %c0_i32, %c0_i32_0 : i32, i32
  }
  func.func @transform_1(%arg0: i32) -> (i32, i32) {
    %c0_i32 = arith.constant 0 : i32
    %c0_i32_0 = arith.constant 0 : i32
    %c0_i32_1 = arith.constant 0 : i32
    return %c0_i32, %c0_i32_0 : i32, i32
  }
  func.func @transform_2(%arg0: i32) -> (i32, i32) {
    %c0_i32 = arith.constant 0 : i32
    %c0_i32_0 = arith.constant 0 : i32
    return %c0_i32, %arg0 : i32, i32
  }
  func.func @transform_3(%arg0: i32) -> (i32, i32, i32) {
    %c0_i32 = arith.constant 0 : i32
    %c0_i32_0 = arith.constant 0 : i32
    %c0_i32_1 = arith.constant 0 : i32
    return %c0_i32, %c0_i32_0, %arg0 : i32, i32, i32
  }
  func.func @transform_4(%arg0: i32) -> (i32, i32) {
    %c0_i32 = arith.constant 0 : i32
    %c0_i32_0 = arith.constant 0 : i32
    return %c0_i32, %arg0 : i32, i32
  }
  func.func @transform_5(%arg0: i32) -> (i32, i32) {
    %c0_i32 = arith.constant 0 : i32
    %c0_i32_0 = arith.constant 0 : i32
    return %c0_i32, %arg0 : i32, i32
  }
}

</mosaic_0001>

<llo_original>
// kernel: tpu_custom_call.1
$region0: #{tpu_custom_call.1}
  #allocation0 [shape = 'u32[]', space=smem, size = 0x4, offset = 0x4, fixed_abs, tag = 'smem constant byte address 0x4 - core index']
  #allocation1 [shape = 'u32[144,128]{1,0:T(1,128)}', space=vmem, size = 0x12000, scoped, tag = 'internal scratch']
  %s0 = inlined_call_operand.hbm [shape: f32[2,224], index: 0, kind: input, shape index: {}]
  %s1 = inlined_call_operand.hbm [shape: f32[24,24], index: 1, kind: input, shape index: {}]
  %s2 = inlined_call_operand.hbm [shape: f32[3,512], index: 2, kind: input, shape index: {}]
  %s3 = inlined_call_operand.hbm [shape: s8[3,224,512], index: 3, kind: input, shape index: {}]
  %s4 = inlined_call_operand.hbm [shape: f32[24,512], index: 4, kind: input, shape index: {}]
  %s5 = inlined_call_operand.hbm [shape: f32[6,512], index: 5, kind: output, shape index: {}]
  %s6 = sld [smem:[#allocation0]]
  $region73: #{tpu_custom_call.1} parent=0
    _
  %s8 = ssub.s32 1, %s6
  %s9 = scalar_select 0, %s8, %s6
  $region1: #{tpu_custom_call.1} parent=0
    #allocation2 [shape = 'u8[2048]{0}', space=vmem, size = 0x800, scoped, tag = 'input window, operand 0, single buffered']
    #allocation3 [shape = 's32[2]{0}', space=sflag, size = 0x8, scoped, tag = 'scoped memory for tpu_custom_call.1']
    #allocation4 [shape = 's32[2]{0}', space=sflag, size = 0x8, scoped, tag = 'scoped memory for tpu_custom_call.1']
    #allocation5 [shape = 'u8[12288]{0}', space=vmem, size = 0x3000, scoped, tag = 'input window, operand 1, single buffered']
    #allocation6 [shape = 's32[1]{0}', space=sflag, size = 0x4, scoped, tag = 'scoped memory for tpu_custom_call.1']
    #allocation7 [shape = 'u8[8192]{0}', space=vmem, size = 0x2000, scoped, tag = 'input window, operand 2']
    #allocation8 [shape = 'u8[344064]{0}', space=vmem, size = 0x54000, scoped, tag = 'input window, operand 3']
    #allocation9 [shape = 'u8[49152]{0}', space=vmem, size = 0xc000, scoped, tag = 'input window, operand 4']
    #allocation10 [shape = 'u8[16384]{0}', space=vmem, size = 0x4000, scoped, tag = 'output window, operand 0']
    %10 = vsyncpa [#allocation3], 0
    %11 = vsyncpa [#allocation6], 0
    %12 = vsyncpa [#allocation4], 0
    %s13 = scalar_lea.sflag [#allocation4], 1
    %14 = vsyncpa %s13, 0
    loop: start=0, step=1, limit=4
    $region2: #{tpu_custom_call.1} parent=1 // loop_pre_header
      _
    $region3: #{tpu_custom_call.1} parent=1 // loop_header
      %s16 = sphi 0, %s20
      %p17 = scmp.ge.s32.totalorder %s16, 4
      %s24 = sphi 0, %s24
      %s26 = sphi 0, %s24
      %s27 = sphi 0, %s26
      %s41 = sphi 0, %s27
      %s45 = sphi 0, %s45
      %s47 = sphi 0, %s45
      %s48 = sphi 0, %s47
      %s62 = sphi 0, %s48
      %s68 = sphi 0, %s70
      %s71 = sphi 0, %s68
      %s72 = sphi 0, %s71
      %s88 = sphi 0, %s72
      %s94 = sphi 0, %s96
      %s97 = sphi 0, %s94
      %s98 = sphi 0, %s97
      %s114 = sphi 0, %s98
      %s120 = sphi 0, %s122
      %s123 = sphi 0, %s120
      %s124 = sphi 0, %s123
      %s140 = sphi 0, %s124
      %s146 = sphi 0, %s148
      %s149 = sphi 0, %s146
      %s150 = sphi 0, %s149
      %s166 = sphi 0, %s150
    $region4: #{tpu_custom_call.1} parent=1 // loop_header_branch
      %19 = sbr.rel (%p17) target = $region8
    $region5: #{tpu_custom_call.1} parent=1 // loop_body
      %s21 = ssub.s32 %s16, 1
      %s22 = ssub.s32 %s16, 2
      %s23 = sadd.s32 %s16, 1
      %s25 = sadd.s32 %s24, 1
      %p28 = scmp.eq.s32.totalorder %s16, 1
      %p29 = scmp.ne.s32.totalorder %s24, %s26
      %p30 = scmp.eq.s32.totalorder %s16, 0
      %p31 = por %p29, %p30
      %p32 = scmp.ne.s32.totalorder %s24, %s26
      %p33 = scmp.eq.s32.totalorder %s21, 1
      %p34 = por %p32, %p33
      %p35 = scmp.ne.s32.totalorder %s26, %s27
      %p36 = scmp.eq.s32.totalorder %s21, 0
      %p37 = por %p35, %p36
      %p38 = scmp.ne.s32.totalorder %s26, %s27
      %p39 = scmp.eq.s32.totalorder %s22, 1
      %p40 = por %p38, %p39
      %p42 = scmp.ne.s32.totalorder %s27, %s41
      %p43 = scmp.eq.s32.totalorder %s22, 0
      %p44 = por %p42, %p43
      %s46 = sadd.s32 %s45, 1
      %p49 = scmp.eq.s32.totalorder %s16, 1
      %p50 = scmp.ne.s32.totalorder %s45, %s47
      %p51 = scmp.eq.s32.totalorder %s16, 0
      %p52 = por %p50, %p51
      %p53 = scmp.ne.s32.totalorder %s45, %s47
      %p54 = scmp.eq.s32.totalorder %s21, 1
      %p55 = por %p53, %p54
      %p56 = scmp.ne.s32.totalorder %s47, %s48
      %p57 = scmp.eq.s32.totalorder %s21, 0
      %p58 = por %p56, %p57
      %p59 = scmp.ne.s32.totalorder %s47, %s48
      %p60 = scmp.eq.s32.totalorder %s22, 1
      %p61 = por %p59, %p60
      %p63 = scmp.ne.s32.totalorder %s48, %s62
      %p64 = scmp.eq.s32.totalorder %s22, 0
      %p65 = por %p63, %p64
      %s66 = ssub.s32 %s16, %s23
      %p67 = scmp.eq.s32.totalorder %s66, 0
      %s69 = sadd.s32 %s68, 1
      %s70 = scalar_select %p67, %s68, %s69
      %p73 = pneg %p67
      %p74 = scmp.eq.s32.totalorder %s16, 1
      %p75 = por %p73, %p74
      %p76 = scmp.ne.s32.totalorder %s68, %s71
      %p77 = scmp.eq.s32.totalorder %s16, 0
      %p78 = por %p76, %p77
      %p79 = scmp.ne.s32.totalorder %s68, %s71
      %p80 = scmp.eq.s32.totalorder %s21, 1
      %p81 = por %p79, %p80
      %p82 = scmp.ne.s32.totalorder %s71, %s72
      %p83 = scmp.eq.s32.totalorder %s21, 0
      %p84 = por %p82, %p83
      %p85 = scmp.ne.s32.totalorder %s71, %s72
      %p86 = scmp.eq.s32.totalorder %s22, 1
      %p87 = por %p85, %p86
      %p89 = scmp.ne.s32.totalorder %s72, %s88
      %p90 = scmp.eq.s32.totalorder %s22, 0
      %p91 = por %p89, %p90
      %s92 = ssub.s32 %s16, %s23
      %p93 = scmp.eq.s32.totalorder %s92, 0
      %s95 = sadd.s32 %s94, 1
      %s96 = scalar_select %p93, %s94, %s95
      %p99 = pneg %p93
      %p100 = scmp.eq.s32.totalorder %s16, 1
      %p101 = por %p99, %p100
      %p102 = scmp.ne.s32.totalorder %s94, %s97
      %p103 = scmp.eq.s32.totalorder %s16, 0
      %p104 = por %p102, %p103
      %p105 = scmp.ne.s32.totalorder %s94, %s97
      %p106 = scmp.eq.s32.totalorder %s21, 1
      %p107 = por %p105, %p106
      %p108 = scmp.ne.s32.totalorder %s97, %s98
      %p109 = scmp.eq.s32.totalorder %s21, 0
      %p110 = por %p108, %p109
      %p111 = scmp.ne.s32.totalorder %s97, %s98
      %p112 = scmp.eq.s32.totalorder %s22, 1
      %p113 = por %p111, %p112
      %p115 = scmp.ne.s32.totalorder %s98, %s114
      %p116 = scmp.eq.s32.totalorder %s22, 0
      %p117 = por %p115, %p116
      %s118 = ssub.s32 %s16, %s23
      %p119 = scmp.eq.s32.totalorder %s118, 0
      %s121 = sadd.s32 %s120, 1
      %s122 = scalar_select %p119, %s120, %s121
      %p125 = pneg %p119
      %p126 = scmp.eq.s32.totalorder %s16, 1
      %p127 = por %p125, %p126
      %p128 = scmp.ne.s32.totalorder %s120, %s123
      %p129 = scmp.eq.s32.totalorder %s16, 0
      %p130 = por %p128, %p129
      %p131 = scmp.ne.s32.totalorder %s120, %s123
      %p132 = scmp.eq.s32.totalorder %s21, 1
      %p133 = por %p131, %p132
      %p134 = scmp.ne.s32.totalorder %s123, %s124
      %p135 = scmp.eq.s32.totalorder %s21, 0
      %p136 = por %p134, %p135
      %p137 = scmp.ne.s32.totalorder %s123, %s124
      %p138 = scmp.eq.s32.totalorder %s22, 1
      %p139 = por %p137, %p138
      %p141 = scmp.ne.s32.totalorder %s124, %s140
      %p142 = scmp.eq.s32.totalorder %s22, 0
      %p143 = por %p141, %p142
      %s144 = ssub.s32 %s16, %s23
      %p145 = scmp.eq.s32.totalorder %s144, 0
      %s147 = sadd.s32 %s146, 1
      %s148 = scalar_select %p145, %s146, %s147
      %p151 = pneg %p145
      %p152 = scmp.eq.s32.totalorder %s16, 1
      %p153 = por %p151, %p152
      %p154 = scmp.ne.s32.totalorder %s146, %s149
      %p155 = scmp.eq.s32.totalorder %s16, 0
      %p156 = por %p154, %p155
      %p157 = scmp.ne.s32.totalorder %s146, %s149
      %p158 = scmp.eq.s32.totalorder %s21, 1
      %p159 = por %p157, %p158
      %p160 = scmp.ne.s32.totalorder %s149, %s150
      %p161 = scmp.eq.s32.totalorder %s21, 0
      %p162 = por %p160, %p161
      %p163 = scmp.ne.s32.totalorder %s149, %s150
      %p164 = scmp.eq.s32.totalorder %s22, 1
      %p165 = por %p163, %p164
      %p167 = scmp.ne.s32.totalorder %s150, %s166
      %p168 = scmp.eq.s32.totalorder %s22, 0
      %p169 = por %p167, %p168
      %p170 = scmp.le.s32.totalorder 1, %s16
      %p171 = scmp.lt.s32.totalorder %s16, 3
      %p172 = pnand %p170, %p171
      %p173 = pneg %p172
      // Predicated region
      $region9: #{tpu_custom_call.1} parent=5 // pred_check
        _
      $region10: #{tpu_custom_call.1} parent=5 // pred_check_branch
        %175 = sbr.rel (%p172) target = $region12
      $region11: #{tpu_custom_call.1} parent=5 // pred_region
        %s176 = ssub.s32 %s16, 1
        // Predicated region
        $region13: #{tpu_custom_call.1} parent=11 // pred_check
          %p177 = pneg %p37
        $region14: #{tpu_custom_call.1} parent=11 // pred_check_branch
          %179 = sbr.rel (%p177) target = $region16
        $region15: #{tpu_custom_call.1} parent=11 // pred_region
          %s181 = ssub.s32 64, 64
          %182 = vsyncadd [#allocation3], %s181
          %s184 = sshll.u32 [#allocation2], 4
          %s185 = int_to_ptr.vmem [resolvable:$true] %s184
          %187 = dma.hbm_to_vmem [thread:$0]  %s0, 64, %s185, [#allocation3]
        $region16: #{tpu_custom_call.1} parent=11 // pred_fallthru
          _
        // Predicated region
        $region17: #{tpu_custom_call.1} parent=11 // pred_check
          %p188 = pneg %p58
        $region18: #{tpu_custom_call.1} parent=11 // pred_check_branch
          %190 = sbr.rel (%p188) target = $region20
        $region19: #{tpu_custom_call.1} parent=11 // pred_region
          %s192 = ssub.s32 384, 384
          %193 = vsyncadd [#allocation6], %s192
          %s194 = sshll.u32 [#allocation5], 4
          %s195 = int_to_ptr.vmem [resolvable:$true] %s194
          %200 = dma.hbm_to_vmem [thread:$0]  %s1, 384, %s195, [#allocation6], 128, 128, 8
        $region20: #{tpu_custom_call.1} parent=11 // pred_fallthru
          _
      $region12: #{tpu_custom_call.1} parent=5 // pred_fallthru
        _
      %p201 = scmp.lt.s32.totalorder %s16, 2
      // Predicated region
      $region21: #{tpu_custom_call.1} parent=5 // pred_check
        %p202 = pneg %p201
      $region22: #{tpu_custom_call.1} parent=5 // pred_check_branch
        %204 = sbr.rel (%p202) target = $region24
      $region23: #{tpu_custom_call.1} parent=5 // pred_region
        // Predicated region
        $region25: #{tpu_custom_call.1} parent=23 // pred_check
          %p205 = pneg %p78
        $region26: #{tpu_custom_call.1} parent=23 // pred_check_branch
          %207 = sbr.rel (%p205) target = $region28
        $region27: #{tpu_custom_call.1} parent=23 // pred_region
          %s208 = sand.u32 %s16, 1
          %s209 = scalar_lea.sflag [#allocation3], %s208
          %s210 = sand.u32 %s68, 1
          %s211 = smul.addr %s210, 8
          %s212 = scalar_lea.vmem [#allocation7], %s211
          %s213 = smul.u32 2, %s16
          %s215 = ssub.s32 128, 128
          %216 = vsyncadd %s209, %s215
          %s217 = smul.addr %s213, 64
          %s218 = scalar_lea.hbm %s2, %s217
          %s220 = sshll.u32 %s212, 4
          %s221 = int_to_ptr.vmem [resolvable:$true] %s220
          %223 = dma.hbm_to_vmem [thread:$0]  %s218, 128, %s221, %s209
        $region28: #{tpu_custom_call.1} parent=23 // pred_fallthru
          _
        // Predicated region
        $region29: #{tpu_custom_call.1} parent=23 // pred_check
          %p224 = pneg %p104
        $region30: #{tpu_custom_call.1} parent=23 // pred_check_branch
          %226 = sbr.rel (%p224) target = $region32
        $region31: #{tpu_custom_call.1} parent=23 // pred_region
          %s227 = sand.u32 %s16, 1
          %s228 = scalar_lea.sflag [#allocation3], %s227
          %s229 = sand.u32 %s94, 1
          %s230 = smul.addr %s229, 336
          %s231 = scalar_lea.vmem [#allocation8], %s230
          %s232 = smul.u32 2, %s16
          %s234 = ssub.s32 5376, 5376
          %235 = vsyncadd %s228, %s234
          %s236 = smul.addr %s232, 128
          %s237 = scalar_lea.hbm %s3, %s236
          %s238 = sshll.u32 %s231, 4
          %s239 = int_to_ptr.vmem [resolvable:$true] %s238
          %244 = dma.hbm_to_vmem [thread:$0]  %s237, 5376, %s239, %s228, 512, 256, 16
        $region32: #{tpu_custom_call.1} parent=23 // pred_fallthru
          _
        // Predicated region
        $region33: #{tpu_custom_call.1} parent=23 // pred_check
          %p245 = pneg %p130
        $region34: #{tpu_custom_call.1} parent=23 // pred_check_branch
          %247 = sbr.rel (%p245) target = $region36
        $region35: #{tpu_custom_call.1} parent=23 // pred_region
          %s248 = sand.u32 %s16, 1
          %s249 = scalar_lea.sflag [#allocation3], %s248
          %s250 = sand.u32 %s120, 1
          %s251 = smul.addr %s250, 48
          %s252 = scalar_lea.vmem [#allocation9], %s251
          %s253 = smul.u32 2, %s16
          %s255 = ssub.s32 768, 768
          %256 = vsyncadd %s249, %s255
          %s257 = smul.addr %s253, 128
          %s258 = scalar_lea.hbm %s4, %s257
          %s259 = sshll.u32 %s252, 4
          %s260 = int_to_ptr.vmem [resolvable:$true] %s259
          %265 = dma.hbm_to_vmem [thread:$0]  %s258, 768, %s260, %s249, 512, 256, 16
        $region36: #{tpu_custom_call.1} parent=23 // pred_fallthru
          _
      $region24: #{tpu_custom_call.1} parent=5 // pred_fallthru
        _
      %p266 = scmp.le.s32.totalorder 1, %s16
      %p267 = scmp.lt.s32.totalorder %s16, 3
      %p268 = pnand %p266, %p267
      %p269 = pneg %p268
      // Predicated region
      $region37: #{tpu_custom_call.1} parent=5 // pred_check
        _
      $region38: #{tpu_custom_call.1} parent=5 // pred_check_branch
        %271 = sbr.rel (%p268) target = $region40
      $region39: #{tpu_custom_call.1} parent=5 // pred_region
        %s272 = ssub.s32 %s16, 1
        // Predicated region
        $region41: #{tpu_custom_call.1} parent=39 // pred_check
          %p273 = pneg %p37
        $region42: #{tpu_custom_call.1} parent=39 // pred_check_branch
          %275 = sbr.rel (%p273) target = $region44
        $region43: #{tpu_custom_call.1} parent=39 // pred_region
          %276 = dma.done [#allocation3], 64
        $region44: #{tpu_custom_call.1} parent=39 // pred_fallthru
          _
        // Predicated region
        $region45: #{tpu_custom_call.1} parent=39 // pred_check
          %p277 = pneg %p58
        $region46: #{tpu_custom_call.1} parent=39 // pred_check_branch
          %279 = sbr.rel (%p277) target = $region48
        $region47: #{tpu_custom_call.1} parent=39 // pred_region
          %280 = dma.done [#allocation6], 384
        $region48: #{tpu_custom_call.1} parent=39 // pred_fallthru
          _
        %s281 = sand.u32 %s21, 1
        %s282 = scalar_lea.sflag [#allocation3], %s281
        %s283 = sand.u32 %s71, 1
        %s284 = smul.addr %s283, 8
        %s285 = scalar_lea.vmem [#allocation7], %s284
        // Predicated region
        $region49: #{tpu_custom_call.1} parent=39 // pred_check
          %p286 = pneg %p84
        $region50: #{tpu_custom_call.1} parent=39 // pred_check_branch
          %288 = sbr.rel (%p286) target = $region52
        $region51: #{tpu_custom_call.1} parent=39 // pred_region
          %289 = dma.done %s282, 128
        $region52: #{tpu_custom_call.1} parent=39 // pred_fallthru
          _
        %s290 = sand.u32 %s21, 1
        %s291 = scalar_lea.sflag [#allocation3], %s290
        %s292 = sand.u32 %s97, 1
        %s293 = smul.addr %s292, 336
        %s294 = scalar_lea.vmem [#allocation8], %s293
        // Predicated region
        $region53: #{tpu_custom_call.1} parent=39 // pred_check
          %p295 = pneg %p110
        $region54: #{tpu_custom_call.1} parent=39 // pred_check_branch
          %297 = sbr.rel (%p295) target = $region56
        $region55: #{tpu_custom_call.1} parent=39 // pred_region
          %298 = dma.done %s291, 5376
        $region56: #{tpu_custom_call.1} parent=39 // pred_fallthru
          _
        %s299 = sand.u32 %s21, 1
        %s300 = scalar_lea.sflag [#allocation3], %s299
        %s301 = sand.u32 %s123, 1
        %s302 = smul.addr %s301, 48
        %s303 = scalar_lea.vmem [#allocation9], %s302
        // Predicated region
        $region57: #{tpu_custom_call.1} parent=39 // pred_check
          %p304 = pneg %p136
        $region58: #{tpu_custom_call.1} parent=39 // pred_check_branch
          %306 = sbr.rel (%p304) target = $region60
        $region59: #{tpu_custom_call.1} parent=39 // pred_region
          %307 = dma.done %s300, 768
        $region60: #{tpu_custom_call.1} parent=39 // pred_fallthru
          _
        %p308 = pneg %p37
        %p309 = pneg %p34
        %p310 = pneg %p58
        %p311 = pneg %p55
        %s312 = sand.u32 %s21, 1
        %s313 = scalar_lea.sflag [#allocation3], %s312
        %s314 = sand.u32 %s71, 1
        %s315 = smul.addr %s314, 8
        %s316 = scalar_lea.vmem [#allocation7], %s315
        %p317 = pneg %p84
        %p318 = pneg %p81
        %s319 = sand.u32 %s21, 1
        %s320 = scalar_lea.sflag [#allocation3], %s319
        %s321 = sand.u32 %s97, 1
        %s322 = smul.addr %s321, 336
        %s323 = scalar_lea.vmem [#allocation8], %s322
        %p324 = pneg %p110
        %p325 = pneg %p107
        %s326 = sand.u32 %s21, 1
        %s327 = scalar_lea.sflag [#allocation3], %s326
        %s328 = sand.u32 %s123, 1
        %s329 = smul.addr %s328, 48
        %s330 = scalar_lea.vmem [#allocation9], %s329
        %p331 = pneg %p136
        %p332 = pneg %p133
        %p333 = pneg %p162
        %p334 = pneg %p159
        %s335 = sand.u32 %s149, 1
        %s336 = scalar_lea.sflag [#allocation4], %s335
        %s337 = sand.u32 %s149, 1
        %s338 = smul.addr %s337, 16
        %s339 = scalar_lea.vmem [#allocation10], %s338
        %s340 = smul.u32 2, %s21
        %s341 = smul.u32 2, %s21
        %s342 = smul.u32 2, %s21
        %s343 = smul.u32 2, %s21
        %v345 = vld [vmem:[#allocation5] sm:$0xff]
        %v346 = vld [vmem:[#allocation5 + $0x8] sm:$0xff]
        %v347 = vld [vmem:[#allocation5 + $0x10] sm:$0xff]
        %v348 = vld [vmem:[%s303] sm:$0xff]
        %v349 = vld [vmem:[%s303 + $0x8] sm:$0xff]
        %v350 = vld [vmem:[%s303 + $0x10] sm:$0xff]
        %v351 = vld [vmem:[%s303 + $0x18] sm:$0xff]
        %v352 = vld [vmem:[%s303 + $0x20] sm:$0xff]
        %v353 = vld [vmem:[%s303 + $0x28] sm:$0xff]
        %vm354 = vcmask 195584
        %v356 = vsel %vm354, %v345, 0
        %v359 = vsel %vm354, %v346, 0
        %v362 = vsel %vm354, %v347, 0
        %364 = vmatprep.subr.mxu0 0.0
        %365 = vmatpush1.msra.mxu0 0.0
        %366 = vmatprep.subr.mxu0 0.0
        %367 = vmatpush1.msra.mxu0 0.0
        %368 = vmatprep.subr.mxu0 0.0
        %369 = vmatpush1.msra.mxu0 0.0
        %370 = vmatprep.subr.mxu0 0.0
        %371 = vmatpush1.msra.mxu0 0.0
        %372 = vmatprep.subr.mxu0 0.0
        %373 = vmatpush1.msra.mxu0 0.0
        %374 = vmatprep.subr.mxu0 0.0
        %375 = vmatpush1.msra.mxu0 0.0
        %376 = vmatprep.subr.mxu0 0.0
        %377 = vmatpush1.msra.mxu0 0.0
        %378 = vmatprep.subr.mxu0 0.0
        %379 = vmatpush1.msra.mxu0 0.0
        %380 = vmatprep.subr.mxu0 0.0
        %381 = vmatpush1.msra.mxu0 0.0
        %382 = vmatprep.subr.mxu0 0.0
        %383 = vmatpush1.msra.mxu0 0.0
        %384 = vmatprep.subr.mxu0 0.0
        %385 = vmatpush1.msra.mxu0 0.0
        %386 = vmatprep.subr.mxu0 0.0
        %387 = vmatpush1.msra.mxu0 0.0
        %388 = vmatprep.subr.mxu0 0.0
        %389 = vmatpush1.msra.mxu0 0.0
        %390 = vmatprep.subr.mxu0 %v353
        %391 = vmatpush1.msra.mxu0 %v352
        %392 = vmatprep.subr.mxu0 %v351
        %393 = vmatpush1.msra.mxu0 %v350
        %394 = vmatprep.subr.mxu0 %v349
        %395 = vmatpush1.msra.mxu0 %v348
        %396 = vmatprep.subr.mxu0 0.0
        %397 = vmatpush2.msra.mxu0 0.0
        %398 = vmatprep.subr.mxu0 0.0
        %399 = vmatpush2.msra.mxu0 0.0
        %400 = vmatprep.subr.mxu0 0.0
        %401 = vmatpush2.msra.mxu0 0.0
        %402 = vmatprep.subr.mxu0 0.0
        %403 = vmatpush2.msra.mxu0 0.0
        %404 = vmatprep.subr.mxu0 0.0
        %405 = vmatpush2.msra.mxu0 0.0
        %406 = vmatprep.subr.mxu0 0.0
        %407 = vmatpush2.msra.mxu0 0.0
        %408 = vmatprep.subr.mxu0 0.0
        %409 = vmatpush2.msra.mxu0 0.0
        %410 = vmatprep.subr.mxu0 0.0
        %411 = vmatpush2.msra.mxu0 0.0
        %412 = vmatprep.subr.mxu0 0.0
        %413 = vmatpush2.msra.mxu0 0.0
        %414 = vmatprep.subr.mxu0 0.0
        %415 = vmatpush2.msra.mxu0 0.0
        %416 = vmatprep.subr.mxu0 0.0
        %417 = vmatpush2.msra.mxu0 0.0
        %418 = vmatprep.subr.mxu0 0.0
        %419 = vmatpush2.msra.mxu0 0.0
        %420 = vmatprep.subr.mxu0 0.0
        %421 = vmatpush2.msra.mxu0 0.0
        %422 = vmatprep.subr.mxu0 0.0
        %423 = vmatpush2.msra.mxu0 0.0
        %424 = vmatprep.subr.mxu0 0.0
        %425 = vmatpush2.msra.mxu0 0.0
        %426 = vmatprep.subr.mxu0 0.0
        %427 = vmatpush2.msra.mxu0 0.0
        %428 = vmatprep.mubr.f32.mxu0 0.0
        %429 = vmatmul.mubr.f32.gmra.mxu0 %v356
        %v430 = vpop.f32.mrf.mxu0
        %v431 = vadd.f32 0.0, %v430
        %v432 = vpop.f32.mrf.mxu0
        %v433 = vadd.f32 0.0, %v432
        %434 = vmatprep.mubr.f32.mxu0 0.0
        %435 = vmatmul.mubr.f32.gmra.mxu0 %v359
        %v436 = vpop.f32.mrf.mxu0
        %v437 = vadd.f32 0.0, %v436
        %v438 = vpop.f32.mrf.mxu0
        %v439 = vadd.f32 0.0, %v438
        %440 = vmatprep.mubr.f32.mxu0 0.0
        %441 = vmatmul.mubr.f32.gmra.mxu0 %v362
        %v442 = vpop.f32.mrf.mxu0
        %v443 = vadd.f32 0.0, %v442
        %v444 = vpop.f32.mrf.mxu0
        %v445 = vadd.f32 0.0, %v444
        %446 = vdwg.mxu0
        %v447 = vld [vmem:[#allocation2] sm:$0xf]
        %v450 = vunpack.c.l.s4 1983009808
        %v451 = vunpack.c.0.s8 %v450
        %v452 = vlaneseq
        %v453 = vshrl.u32 %v452, 7
        %v454 = vsub.s32 %v451, %v453
        %v455 = vrot.slane %v447, %v454
        %v456 = vcombine.high %v455, %v455
        %v459 = vpack.c.bf16 %v455, %v455
        %v460 = vpack.c.bf16 %v456, %v456
        %v461 = vld [vmem:[%s285] sm:$0x77]
        %v462 = vld [vmem:[%s294] sm:$0xff]
        %v463 = vld [vmem:[%s294 + $0x8] sm:$0xff]
        %v464 = vld [vmem:[%s294 + $0x10] sm:$0xff]
        %v465 = vld [vmem:[%s294 + $0x18] sm:$0xff]
        %v466 = vld [vmem:[%s294 + $0x20] sm:$0xff]
        %v467 = vld [vmem:[%s294 + $0x28] sm:$0xff]
        %v468 = vld [vmem:[%s294 + $0x30] sm:$0xff]
        %v469 = vld [vmem:[%s294 + $0x38] sm:$0xff]
        %v470 = vld [vmem:[%s294 + $0x40] sm:$0xff]
        %v471 = vld [vmem:[%s294 + $0x48] sm:$0xff]
        %v472 = vld [vmem:[%s294 + $0x50] sm:$0xff]
        %v473 = vld [vmem:[%s294 + $0x58] sm:$0xff]
        %v474 = vld [vmem:[%s294 + $0x60] sm:$0xff]
        %v475 = vld [vmem:[%s294 + $0x68] sm:$0xff]
        %v476 = vunpack.c.l.s8.bf16 %v462
        %v477 = vunpack.c.l.s8.bf16 %v463
        %v478 = vunpack.c.h.s8.bf16 %v462
        %v479 = vunpack.c.h.s8.bf16 %v463
        %v480 = vunpack.c.l.s8.bf16 %v464
        %v481 = vunpack.c.l.s8.bf16 %v465
        %v482 = vunpack.c.h.s8.bf16 %v464
        %v483 = vunpack.c.h.s8.bf16 %v465
        %v484 = vunpack.c.l.s8.bf16 %v466
        %v485 = vunpack.c.l.s8.bf16 %v467
        %v486 = vunpack.c.h.s8.bf16 %v466
        %v487 = vunpack.c.h.s8.bf16 %v467
        %v488 = vunpack.c.l.s8.bf16 %v468
        %v489 = vunpack.c.l.s8.bf16 %v469
        %v490 = vunpack.c.h.s8.bf16 %v468
        %v491 = vunpack.c.h.s8.bf16 %v469
        %v492 = vunpack.c.l.s8.bf16 %v470
        %v493 = vunpack.c.l.s8.bf16 %v471
        %v494 = vunpack.c.h.s8.bf16 %v470
        %v495 = vunpack.c.h.s8.bf16 %v471
        %v496 = vunpack.c.l.s8.bf16 %v472
        %v497 = vunpack.c.l.s8.bf16 %v473
        %v498 = vunpack.c.h.s8.bf16 %v472
        %v499 = vunpack.c.h.s8.bf16 %v473
        %v500 = vunpack.c.l.s8.bf16 %v474
        %v501 = vunpack.c.l.s8.bf16 %v475
        %v502 = vunpack.c.h.s8.bf16 %v474
        %v503 = vunpack.c.h.s8.bf16 %v475
        %vm504 = vcmask 785408
        %v506 = vsel %vm504, %v460, 0
        %508 = vmatprep.subr.bf16.mxu0 %v491
        %509 = vmatpush1.bf16.msra.mxu0 %v490
        %510 = vmatprep.subr.bf16.mxu0 %v489
        %511 = vmatpush1.bf16.msra.mxu0 %v488
        %512 = vmatprep.subr.bf16.mxu0 %v487
        %513 = vmatpush1.bf16.msra.mxu0 %v486
        %514 = vmatprep.subr.bf16.mxu0 %v485
        %515 = vmatpush1.bf16.msra.mxu0 %v484
        %516 = vmatprep.subr.bf16.mxu0 %v483
        %517 = vmatpush1.bf16.msra.mxu0 %v482
        %518 = vmatprep.subr.bf16.mxu0 %v481
        %519 = vmatpush1.bf16.msra.mxu0 %v480
        %520 = vmatprep.subr.bf16.mxu0 %v479
        %521 = vmatpush1.bf16.msra.mxu0 %v478
        %522 = vmatprep.subr.bf16.mxu0 %v477
        %523 = vmatpush1.bf16.msra.mxu0 %v476
        %524 = vmatprep.subr.bf16.mxu0 0
        %525 = vmatpush2.bf16.msra.mxu0 0
        %526 = vmatprep.subr.bf16.mxu0 0
        %527 = vmatpush2.bf16.msra.mxu0 0
        %528 = vmatprep.subr.bf16.mxu0 %v503
        %529 = vmatpush2.bf16.msra.mxu0 %v502
        %530 = vmatprep.subr.bf16.mxu0 %v501
        %531 = vmatpush2.bf16.msra.mxu0 %v500
        %532 = vmatprep.subr.bf16.mxu0 %v499
        %533 = vmatpush2.bf16.msra.mxu0 %v498
        %534 = vmatprep.subr.bf16.mxu0 %v497
        %535 = vmatpush2.bf16.msra.mxu0 %v496
        %536 = vmatprep.subr.bf16.mxu0 %v495
        %537 = vmatpush2.bf16.msra.mxu0 %v494
        %538 = vmatprep.subr.bf16.mxu0 %v493
        %539 = vmatpush2.bf16.msra.mxu0 %v492
        %540 = vmatprep.mubr.bf16.mxu0 %v506
        %541 = vmatmul.mubr.bf16.gmra.mxu0 %v459
        %v542 = vpop.f32.mrf.mxu0
        %v543 = vadd.f32 0.0, %v542
        %v544 = vpop.f32.mrf.mxu0
        %v545 = vadd.f32 0.0, %v544
        %v546 = vpop.f32.mrf.mxu0
        %v547 = vpop.f32.mrf.mxu0
        %548 = vdwg.mxu0
        %v550 = vlaneseq
        %v551 = vshrl.u32 %v550, 7
        %v552 = vsub.s32 0, %v551
        %v553 = vrot.slane %v461, %v552
        %v554 = vlaneseq
        %v555 = vshrl.u32 %v554, 7
        %v556 = vsub.s32 4, %v555
        %v557 = vrot.slane %v461, %v556
        %v560 = vlaneseq
        %v561 = vshrl.u32 %v560, 7
        %v562 = vsub.s32 0, %v561
        %v563 = vrot.slane %v553, %v562
        %v564 = vlaneseq
        %v565 = vshrl.u32 %v564, 7
        %v566 = vsub.s32 0, %v565
        %v567 = vrot.slane %v557, %v566
        %v568 = vadd.f32 %v563, %v543
        %v569 = vadd.f32 %v567, %v545
        %s570 = scalar_lea.vmem %s294, 112 [#allocation8]
        %v571 = vld [vmem:[%s570] sm:$0xff]
        %v572 = vld [vmem:[%s570 + $0x8] sm:$0xff]
        %v573 = vld [vmem:[%s570 + $0x10] sm:$0xff]
        %v574 = vld [vmem:[%s570 + $0x18] sm:$0xff]
        %v575 = vld [vmem:[%s570 + $0x20] sm:$0xff]
        %v576 = vld [vmem:[%s570 + $0x28] sm:$0xff]
        %v577 = vld [vmem:[%s570 + $0x30] sm:$0xff]
        %v578 = vld [vmem:[%s570 + $0x38] sm:$0xff]
        %v579 = vld [vmem:[%s570 + $0x40] sm:$0xff]
        %v580 = vld [vmem:[%s570 + $0x48] sm:$0xff]
        %v581 = vld [vmem:[%s570 + $0x50] sm:$0xff]
        %v582 = vld [vmem:[%s570 + $0x58] sm:$0xff]
        %v583 = vld [vmem:[%s570 + $0x60] sm:$0xff]
        %v584 = vld [vmem:[%s570 + $0x68] sm:$0xff]
        %v585 = vunpack.c.l.s8.bf16 %v571
        %v586 = vunpack.c.l.s8.bf16 %v572
        %v587 = vunpack.c.h.s8.bf16 %v571
        %v588 = vunpack.c.h.s8.bf16 %v572
        %v589 = vunpack.c.l.s8.bf16 %v573
        %v590 = vunpack.c.l.s8.bf16 %v574
        %v591 = vunpack.c.h.s8.bf16 %v573
        %v592 = vunpack.c.h.s8.bf16 %v574
        %v593 = vunpack.c.l.s8.bf16 %v575
        %v594 = vunpack.c.l.s8.bf16 %v576
        %v595 = vunpack.c.h.s8.bf16 %v575
        %v596 = vunpack.c.h.s8.bf16 %v576
        %v597 = vunpack.c.l.s8.bf16 %v577
        %v598 = vunpack.c.l.s8.bf16 %v578
        %v599 = vunpack.c.h.s8.bf16 %v577
        %v600 = vunpack.c.h.s8.bf16 %v578
        %v601 = vunpack.c.l.s8.bf16 %v579
        %v602 = vunpack.c.l.s8.bf16 %v580
        %v603 = vunpack.c.h.s8.bf16 %v579
        %v604 = vunpack.c.h.s8.bf16 %v580
        %v605 = vunpack.c.l.s8.bf16 %v581
        %v606 = vunpack.c.l.s8.bf16 %v582
        %v607 = vunpack.c.h.s8.bf16 %v581
        %v608 = vunpack.c.h.s8.bf16 %v582
        %v609 = vunpack.c.l.s8.bf16 %v583
        %v610 = vunpack.c.l.s8.bf16 %v584
        %v611 = vunpack.c.h.s8.bf16 %v583
        %v612 = vunpack.c.h.s8.bf16 %v584
        %613 = vmatprep.subr.bf16.mxu0 %v600
        %614 = vmatpush1.bf16.msra.mxu0 %v599
        %615 = vmatprep.subr.bf16.mxu0 %v598
        %616 = vmatpush1.bf16.msra.mxu0 %v597
        %617 = vmatprep.subr.bf16.mxu0 %v596
        %618 = vmatpush1.bf16.msra.mxu0 %v595
        %619 = vmatprep.subr.bf16.mxu0 %v594
        %620 = vmatpush1.bf16.msra.mxu0 %v593
        %621 = vmatprep.subr.bf16.mxu0 %v592
        %622 = vmatpush1.bf16.msra.mxu0 %v591
        %623 = vmatprep.subr.bf16.mxu0 %v590
        %624 = vmatpush1.bf16.msra.mxu0 %v589
        %625 = vmatprep.subr.bf16.mxu0 %v588
        %626 = vmatpush1.bf16.msra.mxu0 %v587
        %627 = vmatprep.subr.bf16.mxu0 %v586
        %628 = vmatpush1.bf16.msra.mxu0 %v585
        %629 = vmatprep.subr.bf16.mxu0 0
        %630 = vmatpush2.bf16.msra.mxu0 0
        %631 = vmatprep.subr.bf16.mxu0 0
        %632 = vmatpush2.bf16.msra.mxu0 0
        %633 = vmatprep.subr.bf16.mxu0 %v612
        %634 = vmatpush2.bf16.msra.mxu0 %v611
        %635 = vmatprep.subr.bf16.mxu0 %v610
        %636 = vmatpush2.bf16.msra.mxu0 %v609
        %637 = vmatprep.subr.bf16.mxu0 %v608
        %638 = vmatpush2.bf16.msra.mxu0 %v607
        %639 = vmatprep.subr.bf16.mxu0 %v606
        %640 = vmatpush2.bf16.msra.mxu0 %v605
        %641 = vmatprep.subr.bf16.mxu0 %v604
        %642 = vmatpush2.bf16.msra.mxu0 %v603
        %643 = vmatprep.subr.bf16.mxu0 %v602
        %644 = vmatpush2.bf16.msra.mxu0 %v601
        %645 = vmatprep.mubr.bf16.mxu0 %v506
        %646 = vmatmul.mubr.bf16.gmra.mxu0 %v459
        %v647 = vpop.f32.mrf.mxu0
        %v648 = vadd.f32 0.0, %v647
        %v649 = vpop.f32.mrf.mxu0
        %v650 = vadd.f32 0.0, %v649
        %v651 = vpop.f32.mrf.mxu0
        %v652 = vpop.f32.mrf.mxu0
        %653 = vdwg.mxu0
        %v654 = vlaneseq
        %v655 = vshrl.u32 %v654, 7
        %v656 = vsub.s32 1, %v655
        %v657 = vrot.slane %v461, %v656
        %v658 = vlaneseq
        %v659 = vshrl.u32 %v658, 7
        %v660 = vsub.s32 5, %v659
        %v661 = vrot.slane %v461, %v660
        %v664 = vlaneseq
        %v665 = vshrl.u32 %v664, 7
        %v666 = vsub.s32 1, %v665
        %v667 = vrot.slane %v657, %v666
        %v668 = vlaneseq
        %v669 = vshrl.u32 %v668, 7
        %v670 = vsub.s32 1, %v669
        %v671 = vrot.slane %v661, %v670
        %v672 = vadd.f32 %v667, %v648
        %v673 = vadd.f32 %v671, %v650
        %s674 = scalar_lea.vmem %s294, 224 [#allocation8]
        %v675 = vld [vmem:[%s674] sm:$0xff]
        %v676 = vld [vmem:[%s674 + $0x8] sm:$0xff]
        %v677 = vld [vmem:[%s674 + $0x10] sm:$0xff]
        %v678 = vld [vmem:[%s674 + $0x18] sm:$0xff]
        %v679 = vld [vmem:[%s674 + $0x20] sm:$0xff]
        %v680 = vld [vmem:[%s674 + $0x28] sm:$0xff]
        %v681 = vld [vmem:[%s674 + $0x30] sm:$0xff]
        %v682 = vld [vmem:[%s674 + $0x38] sm:$0xff]
        %v683 = vld [vmem:[%s674 + $0x40] sm:$0xff]
        %v684 = vld [vmem:[%s674 + $0x48] sm:$0xff]
        %v685 = vld [vmem:[%s674 + $0x50] sm:$0xff]
        %v686 = vld [vmem:[%s674 + $0x58] sm:$0xff]
        %v687 = vld [vmem:[%s674 + $0x60] sm:$0xff]
        %v688 = vld [vmem:[%s674 + $0x68] sm:$0xff]
        %v689 = vunpack.c.l.s8.bf16 %v675
        %v690 = vunpack.c.l.s8.bf16 %v676
        %v691 = vunpack.c.h.s8.bf16 %v675
        %v692 = vunpack.c.h.s8.bf16 %v676
        %v693 = vunpack.c.l.s8.bf16 %v677
        %v694 = vunpack.c.l.s8.bf16 %v678
        %v695 = vunpack.c.h.s8.bf16 %v677
        %v696 = vunpack.c.h.s8.bf16 %v678
        %v697 = vunpack.c.l.s8.bf16 %v679
        %v698 = vunpack.c.l.s8.bf16 %v680
        %v699 = vunpack.c.h.s8.bf16 %v679
        %v700 = vunpack.c.h.s8.bf16 %v680
        %v701 = vunpack.c.l.s8.bf16 %v681
        %v702 = vunpack.c.l.s8.bf16 %v682
        %v703 = vunpack.c.h.s8.bf16 %v681
        %v704 = vunpack.c.h.s8.bf16 %v682
        %v705 = vunpack.c.l.s8.bf16 %v683
        %v706 = vunpack.c.l.s8.bf16 %v684
        %v707 = vunpack.c.h.s8.bf16 %v683
        %v708 = vunpack.c.h.s8.bf16 %v684
        %v709 = vunpack.c.l.s8.bf16 %v685
        %v710 = vunpack.c.l.s8.bf16 %v686
        %v711 = vunpack.c.h.s8.bf16 %v685
        %v712 = vunpack.c.h.s8.bf16 %v686
        %v713 = vunpack.c.l.s8.bf16 %v687
        %v714 = vunpack.c.l.s8.bf16 %v688
        %v715 = vunpack.c.h.s8.bf16 %v687
        %v716 = vunpack.c.h.s8.bf16 %v688
        %717 = vmatprep.subr.bf16.mxu0 %v704
        %718 = vmatpush1.bf16.msra.mxu0 %v703
        %719 = vmatprep.subr.bf16.mxu0 %v702
        %720 = vmatpush1.bf16.msra.mxu0 %v701
        %721 = vmatprep.subr.bf16.mxu0 %v700
        %722 = vmatpush1.bf16.msra.mxu0 %v699
        %723 = vmatprep.subr.bf16.mxu0 %v698
        %724 = vmatpush1.bf16.msra.mxu0 %v697
        %725 = vmatprep.subr.bf16.mxu0 %v696
        %726 = vmatpush1.bf16.msra.mxu0 %v695
        %727 = vmatprep.subr.bf16.mxu0 %v694
        %728 = vmatpush1.bf16.msra.mxu0 %v693
        %729 = vmatprep.subr.bf16.mxu0 %v692
        %730 = vmatpush1.bf16.msra.mxu0 %v691
        %731 = vmatprep.subr.bf16.mxu0 %v690
        %732 = vmatpush1.bf16.msra.mxu0 %v689
        %733 = vmatprep.subr.bf16.mxu0 0
        %734 = vmatpush2.bf16.msra.mxu0 0
        %735 = vmatprep.subr.bf16.mxu0 0
        %736 = vmatpush2.bf16.msra.mxu0 0
        %737 = vmatprep.subr.bf16.mxu0 %v716
        %738 = vmatpush2.bf16.msra.mxu0 %v715
        %739 = vmatprep.subr.bf16.mxu0 %v714
        %740 = vmatpush2.bf16.msra.mxu0 %v713
        %741 = vmatprep.subr.bf16.mxu0 %v712
        %742 = vmatpush2.bf16.msra.mxu0 %v711
        %743 = vmatprep.subr.bf16.mxu0 %v710
        %744 = vmatpush2.bf16.msra.mxu0 %v709
        %745 = vmatprep.subr.bf16.mxu0 %v708
        %746 = vmatpush2.bf16.msra.mxu0 %v707
        %747 = vmatprep.subr.bf16.mxu0 %v706
        %748 = vmatpush2.bf16.msra.mxu0 %v705
        %749 = vmatprep.mubr.bf16.mxu0 %v506
        %750 = vmatmul.mubr.bf16.gmra.mxu0 %v459
        %v751 = vpop.f32.mrf.mxu0
        %v752 = vadd.f32 0.0, %v751
        %v753 = vpop.f32.mrf.mxu0
        %v754 = vadd.f32 0.0, %v753
        %v755 = vpop.f32.mrf.mxu0
        %v756 = vpop.f32.mrf.mxu0
        %757 = vdwg.mxu0
        %v758 = vlaneseq
        %v759 = vshrl.u32 %v758, 7
        %v760 = vsub.s32 2, %v759
        %v761 = vrot.slane %v461, %v760
        %v762 = vlaneseq
        %v763 = vshrl.u32 %v762, 7
        %v764 = vsub.s32 6, %v763
        %v765 = vrot.slane %v461, %v764
        %v768 = vlaneseq
        %v769 = vshrl.u32 %v768, 7
        %v770 = vsub.s32 2, %v769
        %v771 = vrot.slane %v761, %v770
        %v772 = vlaneseq
        %v773 = vshrl.u32 %v772, 7
        %v774 = vsub.s32 2, %v773
        %v775 = vrot.slane %v765, %v774
        %v776 = vadd.f32 %v771, %v752
        %v777 = vadd.f32 %v775, %v754
        %v778 = vmul.f32 %v431, %v568
        %v779 = vmul.f32 %v433, %v569
        %v782 = vrot.slane %v672, 6
        %v783 = vrot.slane %v673, 6
        %v786 = vmul.f32 %v431, %v782
        %v787 = vmul.f32 %v433, %v783
        %v790 = vrot.slane %v786, 2
        %v791 = vrot.slane %v787, 2
        %v794 = vadd.f32 %v778, %v790
        %v795 = vadd.f32 %v779, %v791
        %v798 = vrot.slane %v776, 4
        %v799 = vrot.slane %v777, 4
        %v802 = vmul.f32 %v431, %v798
        %v803 = vmul.f32 %v433, %v799
        %v806 = vrot.slane %v802, 4
        %v807 = vrot.slane %v803, 4
        %v810 = vadd.f32 %v794, %v806
        %v811 = vadd.f32 %v795, %v807
        %v814 = vrot.slane %v431, 6
        %v815 = vrot.slane %v433, 6
        %v818 = vadd.f32 %v810, %v814
        %v819 = vadd.f32 %v811, %v815
        %820 = vst [vmem:[%s339] sm:$0x3] %v818
        %821 = vst [vmem:[%s339 + $0x8] sm:$0x3] %v819
        %v822 = vmul.f32 %v437, %v568
        %v823 = vmul.f32 %v439, %v569
        %v824 = vmul.f32 %v437, %v782
        %v825 = vmul.f32 %v439, %v783
        %v828 = vrot.slane %v824, 2
        %v829 = vrot.slane %v825, 2
        %v832 = vadd.f32 %v822, %v828
        %v833 = vadd.f32 %v823, %v829
        %v834 = vmul.f32 %v437, %v798
        %v835 = vmul.f32 %v439, %v799
        %v838 = vrot.slane %v834, 4
        %v839 = vrot.slane %v835, 4
        %v842 = vadd.f32 %v832, %v838
        %v843 = vadd.f32 %v833, %v839
        %v846 = vrot.slane %v437, 6
        %v847 = vrot.slane %v439, 6
        %v850 = vadd.f32 %v842, %v846
        %v851 = vadd.f32 %v843, %v847
        %v854 = vrot.slane %v850, 6
        %v855 = vrot.slane %v851, 6
        %858 = vst [vmem:[%s339] sm:$0xc] %v854
        %859 = vst [vmem:[%s339 + $0x8] sm:$0xc] %v855
        %v860 = vmul.f32 %v443, %v568
        %v861 = vmul.f32 %v445, %v569
        %v862 = vmul.f32 %v443, %v782
        %v863 = vmul.f32 %v445, %v783
        %v866 = vrot.slane %v862, 2
        %v867 = vrot.slane %v863, 2
        %v870 = vadd.f32 %v860, %v866
        %v871 = vadd.f32 %v861, %v867
        %v872 = vmul.f32 %v443, %v798
        %v873 = vmul.f32 %v445, %v799
        %v876 = vrot.slane %v872, 4
        %v877 = vrot.slane %v873, 4
        %v880 = vadd.f32 %v870, %v876
        %v881 = vadd.f32 %v871, %v877
        %v884 = vrot.slane %v443, 6
        %v885 = vrot.slane %v445, 6
        %v888 = vadd.f32 %v880, %v884
        %v889 = vadd.f32 %v881, %v885
        %v892 = vrot.slane %v888, 4
        %v893 = vrot.slane %v889, 4
        %896 = vst [vmem:[%s339] sm:$0x30] %v892
        %897 = vst [vmem:[%s339 + $0x8] sm:$0x30] %v893
        %s898 = sand.u32 %s149, 1
        %s899 = scalar_lea.sflag [#allocation4], %s898
        %s900 = sand.u32 %s149, 1
        %s901 = smul.addr %s900, 16
        %s902 = scalar_lea.vmem [#allocation10], %s901
        // Predicated region
        $region61: #{tpu_custom_call.1} parent=39 // pred_check
          %p903 = pneg %p159
        $region62: #{tpu_custom_call.1} parent=39 // pred_check_branch
          %905 = sbr.rel (%p903) target = $region64
        $region63: #{tpu_custom_call.1} parent=39 // pred_region
          %s906 = smul.u32 2, %s21
          %s908 = ssub.s32 256, 256
          %909 = vsyncadd %s899, %s908
          %s910 = smul.addr %s906, 128
          %s911 = scalar_lea.hbm %s5, %s910
          %s913 = sshll.u32 %s902, 4
          %s914 = int_to_ptr.vmem [resolvable:$true] %s913
          %916 = dma.vmem_to_hbm [thread:$0]  %s914, 256, %s911, %s899
        $region64: #{tpu_custom_call.1} parent=39 // pred_fallthru
          _
      $region40: #{tpu_custom_call.1} parent=5 // pred_fallthru
        _
      %p917 = scmp.le.s32.totalorder 2, %s16
      // Predicated region
      $region65: #{tpu_custom_call.1} parent=5 // pred_check
        %p918 = pneg %p917
      $region66: #{tpu_custom_call.1} parent=5 // pred_check_branch
        %920 = sbr.rel (%p918) target = $region68
      $region67: #{tpu_custom_call.1} parent=5 // pred_region
        %s921 = ssub.s32 %s16, 2
        // Predicated region
        $region69: #{tpu_custom_call.1} parent=67 // pred_check
          %p922 = pneg %p165
        $region70: #{tpu_custom_call.1} parent=67 // pred_check_branch
          %924 = sbr.rel (%p922) target = $region72
        $region71: #{tpu_custom_call.1} parent=67 // pred_region
          %s925 = sand.u32 %s150, 1
          %s926 = scalar_lea.sflag [#allocation4], %s925
          %s927 = sand.u32 %s150, 1
          %s928 = smul.addr %s927, 16
          %s929 = scalar_lea.vmem [#allocation10], %s928
          %930 = dma.done %s926, 256
        $region72: #{tpu_custom_call.1} parent=67 // pred_fallthru
          _
      $region68: #{tpu_custom_call.1} parent=5 // pred_fallthru
        _
    $region6: #{tpu_custom_call.1} parent=1 // loop_footer
      %s20 = sadd.s32 1, %s16
    $region7: #{tpu_custom_call.1} parent=1 // loop_footer_branch
      %15 = sbr.rel target = $region3
    $region8: #{tpu_custom_call.1} parent=1 // loop_exit
      _
    %931 = vsyncpa [#allocation3], 1
    %s932 = scalar_lea.sflag [#allocation3], 1
    %933 = vsyncpa %s932, 1
    %934 = vsyncpa [#allocation6], 1
    %935 = vsyncpa [#allocation4], 1
    %s936 = scalar_lea.sflag [#allocation4], 1
    %937 = vsyncpa %s936, 1

</llo_original>
